<compile_context>
chip_gen: v5e
topology: v5e:2x2
jax: 0.10.0
libtpu: 0.0.40
codegen_flags: <defaults>
</compile_context>

<pallas_src>
import functools

import jax
import jax.numpy as jnp
from jax.experimental import pallas as pl
from jax.experimental.pallas import tpu as pltpu

_EPS = 1e-5


def _round_up(x, m):
    return (x + m - 1) // m * m


@functools.lru_cache(maxsize=None)
def _vmem_limit():
    """Generation-aware VMEM budget: ~75% of per-core capacity
    (v5e/v6e: ~96 MiB of 128 MiB; v7x: ~48 MiB of 64 MiB)."""
    try:
        cap = int(pltpu.get_tpu_info().vmem_capacity_bytes)
    except Exception:
        cap = 64 * 1024 * 1024
    return int(cap * 3 // 4)


# ----------------------------- Pallas kernels ------------------------------ #

def _mm_ws_kernel(x_ref, w_ref, b_ref, o_ref, *, relu):
    """Weight-stationary: out = relu?( x @ w + bias ). Whole K/N in one block;
    no accumulator scratch -- epilogue written straight from the MXU result."""
    out = jnp.dot(x_ref[...], w_ref[...], preferred_element_type=jnp.float32)
    out = out + b_ref[...]
    if relu:
        out = jnp.maximum(out, 0.0)
    o_ref[...] = out.astype(o_ref.dtype)


def _mm_ws_add_relu_kernel(x_ref, w_ref, b_ref, r_ref, o_ref):
    """out = relu( x @ w + bias + residual )  -- bottleneck conv3/bn3 + skip."""
    out = jnp.dot(x_ref[...], w_ref[...], preferred_element_type=jnp.float32)
    out = out + b_ref[...] + r_ref[...].astype(jnp.float32)
    o_ref[...] = jnp.maximum(out, 0.0).astype(o_ref.dtype)


def _conv3x3_tap_kernel(x_ref, w_ref, b_ref, o_ref):
    """3x3 / stride-1 / pad-1 conv + folded BN + ReLU, one image per grid step.

    x_ref: (1, H+2, W+2, C)  padded activation (whole image, VMEM resident)
    w_ref: (9*C, Cout)       tap-major weight rows in (dy, dx, cin) order
    b_ref: (1, Cout)         folded BN bias (f32)
    o_ref: (1, H, W, Cout)

    The 9 taps are accumulated in f32 one output row at a time, so no im2col
    patch matrix ever touches HBM.
    """
    C = x_ref.shape[-1]
    Ho, Wo, Cout = o_ref.shape[1], o_ref.shape[2], o_ref.shape[3]

    @pl.loop(0, Ho)
    def _(iy):
        acc = jnp.zeros((Wo, Cout), jnp.float32)
        for dy in range(3):
            row = x_ref[0, iy + dy]                      # (W+2, C)
            for dx in range(3):
                tap = dy * 3 + dx
                w_tap = w_ref[tap * C:(tap + 1) * C, :]  # (C, Cout)
                acc = acc + jnp.dot(row[dx:dx + Wo], w_tap,
                                    preferred_element_type=jnp.float32)
        out = jnp.maximum(acc + b_ref[...], 0.0)
        o_ref[0, iy] = out.astype(o_ref.dtype)


# ----------------------------- tiling helpers ------------------------------ #

def _pick_tile_m(M):
    """Largest tm <= 512 that still gives >= 2 grid tiles when possible
    (keeps both v7x TensorCores busy; v5e/v6e are single-TC and unaffected)."""
    tm = 512
    while tm > 8 and 2 * tm > M:
        tm //= 2
    return _round_up(M, tm), tm


def _matmul_ws(x, w, bias, residual=None, *, relu=True):
    """Weight-stationary fused matmul.

    x [M,K] bf16, w [Kw,N] bf16 (Kw >= K, N a multiple of 128; the whole weight
    stays VMEM resident), bias [1,N] f32, residual [M,N] bf16 (optional).
    Grid runs over M only.
    """
    x = x.astype(jnp.bfloat16)
    if residual is not None:
        residual = residual.astype(jnp.bfloat16)
    M, K = x.shape
    Kw, N = w.shape
    if K != Kw:                           # stem im2col: pad K up to the weight rows
        x = jnp.pad(x, ((0, 0), (0, Kw - K)))
    Mp, tm = _pick_tile_m(M)
    if Mp != M:
        x = jnp.pad(x, ((0, Mp - M), (0, 0)))
        if residual is not None:
            residual = jnp.pad(residual, ((0, Mp - M), (0, 0)))
    grid_m = Mp // tm

    x_kwargs = {}
    if grid_m >= 4:                       # deepen activation buffering on long M grids
        x_kwargs["pipeline_mode"] = pl.Buffered(3)

    in_specs = [
        pl.BlockSpec((tm, Kw), lambda i: (i, 0), **x_kwargs),
        pl.BlockSpec((Kw, N), lambda i: (0, 0)),   # weight: fetched once, stays resident
        pl.BlockSpec((1, N), lambda i: (0, 0)),
    ]
    args = [x, w, bias]
    if residual is not None:
        in_specs.append(pl.BlockSpec((tm, N), lambda i: (i, 0)))
        args.append(residual)
        kernel = _mm_ws_add_relu_kernel
    else:
        kernel = functools.partial(_mm_ws_kernel, relu=relu)

    bytes_accessed = 2 * (Mp * Kw + Kw * N + Mp * N) + 4 * N
    if residual is not None:
        bytes_accessed += 2 * Mp * N

    out = pl.pallas_call(
        kernel,
        out_shape=jax.ShapeDtypeStruct((Mp, N), jnp.bfloat16),
        grid=(grid_m,),
        in_specs=in_specs,
        out_specs=pl.BlockSpec((tm, N), lambda i: (i, 0)),
        compiler_params=pltpu.CompilerParams(
            dimension_semantics=("parallel",),
            vmem_limit_bytes=_vmem_limit(),
        ),
        cost_estimate=pl.CostEstimate(
            flops=2 * Mp * N * Kw, transcendentals=0,
            bytes_accessed=int(bytes_accessed)),
    )(*args)
    return out[:M] if Mp != M else out


# ------------------------------- conv wrappers ------------------------------ #

def _im2col(x, k, stride, pad):
    """x: [B,H,W,C] -> patches [B*Ho*Wo, k*k*C] in (dy, dx, c) order, bf16."""
    B, H, W, C = x.shape
    if pad:
        x = jnp.pad(x, ((0, 0), (pad, pad), (pad, pad), (0, 0)))
    Ho = (H + 2 * pad - k) // stride + 1
    Wo = (W + 2 * pad - k) // stride + 1
    cols = []
    for dy in range(k):
        for dx in range(k):
            cols.append(x[:, dy:dy + stride * Ho:stride,
                          dx:dx + stride * Wo:stride, :])
    patches = jnp.concatenate(cols, axis=-1)
    return patches.reshape(B * Ho * Wo, k * k * C).astype(jnp.bfloat16), (B, Ho, Wo)


@functools.partial(jax.jit, static_argnames=("k", "stride", "pad", "relu"))
def conv_im2col_bn(x, w, bias, *, k, stride, pad, relu=True):
    """Conv(k, stride, pad) + folded BN (+ReLU) via im2col + weight-stationary matmul.
    Only used for the stem 7x7/s2 and the single strided 3x3 (layer2 block0)."""
    patches, (B, Ho, Wo) = _im2col(x, k, stride, pad)
    out = _matmul_ws(patches, w, bias, relu=relu)
    return out.reshape(B, Ho, Wo, w.shape[1])


@jax.jit
def conv3x3_bn_relu(x, w, bias):
    """3x3 stride-1 conv + folded BN + ReLU with the in-VMEM tap-accumulation kernel."""
    x = x.astype(jnp.bfloat16)
    B, H, W, C = x.shape
    Cout = w.shape[1]
    xp = jnp.pad(x, ((0, 0), (1, 1), (1, 1), (0, 0)))
    return pl.pallas_call(
        _conv3x3_tap_kernel,
        out_shape=jax.ShapeDtypeStruct((B, H, W, Cout), jnp.bfloat16),
        grid=(B,),
        in_specs=[
            pl.BlockSpec((1, H + 2, W + 2, C), lambda b: (b, 0, 0, 0)),
            pl.BlockSpec((9 * C, Cout), lambda b: (0, 0)),   # weight stays resident
            pl.BlockSpec((1, Cout), lambda b: (0, 0)),
        ],
        out_specs=pl.BlockSpec((1, H, W, Cout), lambda b: (b, 0, 0, 0)),
        compiler_params=pltpu.CompilerParams(
            dimension_semantics=("parallel",),
            vmem_limit_bytes=_vmem_limit(),
        ),
        cost_estimate=pl.CostEstimate(
            flops=2 * B * H * W * 9 * C * Cout, transcendentals=0,
            bytes_accessed=int(2 * (B * (H + 2) * (W + 2) * C + 9 * C * Cout
                                    + B * H * W * Cout) + 4 * Cout)),
    )(xp, w, bias)


@functools.partial(jax.jit, static_argnames=("stride", "relu"))
def conv1x1_bn(x, w, bias, *, stride=1, relu=True):
    """1x1 conv (optional stride) + folded BN (+ ReLU)."""
    if stride > 1:
        x = x[:, ::stride, ::stride, :]
    B, H, W, C = x.shape
    out = _matmul_ws(x.reshape(B * H * W, C), w, bias, relu=relu)
    return out.reshape(B, H, W, w.shape[1])


@jax.jit
def conv1x1_bn_add_relu(x, w, bias, residual):
    """1x1 conv + folded BN + residual add + ReLU (bottleneck conv3/bn3 + skip)."""
    B, H, W, C = x.shape
    N = w.shape[1]
    out = _matmul_ws(x.reshape(B * H * W, C), w, bias,
                     residual=residual.reshape(B * H * W, N))
    return out.reshape(B, H, W, N)


@jax.jit
def maxpool_3x3_s2_p1(x):
    """nn.MaxPool2d(3, stride=2, padding=1) on NHWC -- fused pairwise max tree in XLA."""
    B, H, W, C = x.shape
    neg = jnp.finfo(x.dtype).min
    xp = jnp.pad(x, ((0, 0), (1, 1), (1, 1), (0, 0)), constant_values=neg)
    Ho = (H + 2 - 3) // 2 + 1
    Wo = (W + 2 - 3) // 2 + 1
    out = None
    for dy in range(3):
        for dx in range(3):
            win = xp[:, dy:dy + 2 * Ho:2, dx:dx + 2 * Wo:2, :]
            out = win if out is None else jnp.maximum(out, win)
    return out


# --------------------------- parameter construction ------------------------ #

def _ch(c):
    """Channel count padded to a multiple of 128 (lane-dense, no per-layer pad/slice)."""
    return _round_up(c, 128)


def _init_conv_bn(key, cout, cin, k, *, cin_pad=None, cout_pad=None):
    """Conv(k, bias=False) + eval-mode BN, folded into (weight, bias); channels
    zero-padded to the padded counts so the whole network runs 128-aligned."""
    cin_pad = cin if cin_pad is None else cin_pad
    cout_pad = cout if cout_pad is None else cout_pad
    kw, kb = jax.random.split(key)
    fan_in = cin * k * k
    w = jax.random.normal(kw, (k, k, cin, cout), jnp.float32) * jnp.sqrt(2.0 / fan_in)

    k1, k2, k3, k4 = jax.random.split(kb, 4)
    gamma = 1.0 + 0.01 * jax.random.normal(k1, (cout,), jnp.float32)
    beta = 0.01 * jax.random.normal(k2, (cout,), jnp.float32)
    mean = 0.01 * jax.random.normal(k3, (cout,), jnp.float32)
    var = 1.0 + 0.01 * jax.random.uniform(k4, (cout,), jnp.float32)
    scale = gamma / jnp.sqrt(var + _EPS)
    bias = beta - mean * scale

    w = w * scale[None, None, None, :]                      # fold BN scale into conv
    w = jnp.pad(w, ((0, 0), (0, 0), (0, cin_pad - cin), (0, cout_pad - cout)))
    w = w.reshape(k * k * cin_pad, cout_pad)                # rows in (dy, dx, cin) order
    Kp = _round_up(w.shape[0], 128)                         # stem: 147 -> 256 (zeros)
    if Kp != w.shape[0]:
        w = jnp.pad(w, ((0, Kp - w.shape[0]), (0, 0)))
    bias = jnp.pad(bias, (0, cout_pad - cout))
    return w.astype(jnp.bfloat16), bias.reshape(1, cout_pad).astype(jnp.float32)


def _init_bottleneck(key, inplanes, planes, stride, downsample):
    ks = jax.random.split(key, 4)
    p = {
        "stride": stride,
        "c1": _init_conv_bn(ks[0], planes, inplanes, 1,
                            cin_pad=_ch(inplanes), cout_pad=_ch(planes)),
        "c2": _init_conv_bn(ks[1], planes, planes, 3,
                            cin_pad=_ch(planes), cout_pad=_ch(planes)),
        "c3": _init_conv_bn(ks[2], planes * 4, planes, 1,
                            cin_pad=_ch(planes), cout_pad=_ch(planes * 4)),
    }
    if downsample:
        p["cd"] = _init_conv_bn(ks[3], planes * 4, inplanes, 1,
                                cin_pad=_ch(inplanes), cout_pad=_ch(planes * 4))
    return p


def _init_layer(key, inplanes, planes, blocks, stride):
    layers = []
    need_ds = (stride != 1) or (inplanes != planes * 4)
    layers.append(_init_bottleneck(jax.random.fold_in(key, 0),
                                   inplanes, planes, stride, need_ds))
    inplanes = planes * 4
    for i in range(1, blocks):
        layers.append(_init_bottleneck(jax.random.fold_in(key, i),
                                       inplanes, planes, 1, False))
    return layers


def init_params(key):
    p = {}
    p["conv1"] = _init_conv_bn(jax.random.fold_in(key, 0), 64, 3, 7,
                               cin_pad=3, cout_pad=_ch(64))    # Conv2d(3,64,7,2,3)+BN
    p["layer1"] = _init_layer(jax.random.fold_in(key, 2), 64, 64, 3, 1)    # resnet101 layer1
    p["layer2"] = _init_layer(jax.random.fold_in(key, 3), 256, 128, 4, 2)  # resnet101 layer2
    # own_reslayer_3 and own_reslayer_3_flow load the SAME state_dict -> identical weights.
    p["layer3"] = _init_layer(jax.random.fold_in(key, 4), 512, 256, 23, 1)
    return p


# -------------------------------- forward ---------------------------------- #

def bottleneck_forward(x, p):
    w1, b1 = p["c1"]
    w2, b2 = p["c2"]
    w3, b3 = p["c3"]
    out = conv1x1_bn(x, w1, b1, stride=1, relu=True)
    if p["stride"] == 1:
        out = conv3x3_bn_relu(out, w2, b2)
    else:
        # TODO(synk): the single strided 3x3 conv (layer2 block0) still uses an
        #             im2col patch matrix; every stride-1 3x3 uses the tap kernel.
        out = conv_im2col_bn(out, w2, b2, k=3, stride=p["stride"], pad=1, relu=True)
    if "cd" in p:
        wd, bd = p["cd"]
        residual = conv1x1_bn(x, wd, bd, stride=p["stride"], relu=False)
    else:
        residual = x
    return conv1x1_bn_add_relu(out, w3, b3, residual)


def res_fan_first_stage_forward(in_data, params):
    """in_data: [B, 4, H, W] NCHW (3 RGB channels + 1 flow channel)."""
    B = in_data.shape[0]
    im_data = in_data[:, :3]                               # torch.split(in_data,[3,1],1)[0]
    flow = in_data[:, 3:4]                                 # torch.split(in_data,[3,1],1)[1]
    flow3 = jnp.concatenate([flow, flow, flow], axis=1)    # torch.cat((flow,)*3, 1)

    # frontend / frontend_flow and own_reslayer_3 / own_reslayer_3_flow share every
    # weight -> run both streams through the network as one 2B batch.
    x = jnp.concatenate([im_data, flow3], axis=0)          # [2B, 3, H, W]
    x = jnp.transpose(x, (0, 2, 3, 1))                     # NCHW -> NHWC

    w1, b1 = params["conv1"]
    x = conv_im2col_bn(x, w1, b1, k=7, stride=2, pad=3, relu=True)
    x = maxpool_3x3_s2_p1(x)
    for p in params["layer1"]:
        x = bottleneck_forward(x, p)
    for p in params["layer2"]:
        x = bottleneck_forward(x, p)
    for p in params["layer3"]:
        x = bottleneck_forward(x, p)

    x = jnp.transpose(x, (0, 3, 1, 2)).astype(jnp.float32)  # back to NCHW
    return x[:B], x[B:]


# ---------------------------------- main ------------------------------------ #

if __name__ == "__main__":
    key = jax.random.PRNGKey(0)
    params = init_params(jax.random.fold_in(key, 1))
    in_data = jax.random.normal(jax.random.fold_in(key, 2), (2, 4, 16, 16), jnp.float32)

    x, f = res_fan_first_stage_forward(in_data, params)
    jax.block_until_ready((x, f))

    assert x.shape == (2, 1024, 2, 2), x.shape
    assert f.shape == (2, 1024, 2, 2), f.shape
    assert bool(jnp.isfinite(x).all()) and bool(jnp.isfinite(f).all())
    print("KERNEL_OK")
</pallas_src>

<mosaic_0001>
module attributes {stable_mosaic.version = 11 : i64} {
  func.func @_mm_ws_kernel(%arg0: i32, %arg1: memref<128x256xbf16, #tpu.memory_space<vmem>>, %arg2: memref<256x128xbf16, #tpu.memory_space<vmem>>, %arg3: memref<1x128xf32, #tpu.memory_space<vmem>>, %arg4: memref<128x128xbf16, #tpu.memory_space<vmem>>) attributes {dimension_semantics = [#tpu.dimension_semantics<parallel>], iteration_bounds = array<i64: 2>, scalar_prefetch = 0 : i64, scratch_operands = 0 : i64, tpu.core_type = #tpu.core_type<tc>, window_params = [{transform_indices = @transform_0, window_bounds = array<i64: 128, 256>}, {pipeline_mode = #tpu.pipeline_mode<synchronous>, transform_indices = @transform_1, window_bounds = array<i64: 256, 128>}, {pipeline_mode = #tpu.pipeline_mode<synchronous>, transform_indices = @transform_2, window_bounds = array<i64: 1, 128>}, {transform_indices = @transform_3, window_bounds = array<i64: 128, 128>}]} {
    %c0 = arith.constant 0 : index
    %c0_0 = arith.constant 0 : index
    %0 = vector.load %arg1[%c0, %c0_0] : memref<128x256xbf16, #tpu.memory_space<vmem>>, vector<128x256xbf16>
    %c0_1 = arith.constant 0 : index
    %c0_2 = arith.constant 0 : index
    %1 = vector.load %arg2[%c0_1, %c0_2] : memref<256x128xbf16, #tpu.memory_space<vmem>>, vector<256x128xbf16>
    %cst = arith.constant dense<0.000000e+00> : vector<128x128xf32>
    %2 = tpu.matmul %0, %1, %cst {dimension_numbers = #tpu.dot_dimension_numbers<[1], [0], [0], [1], [0, 0, 1, 1], [], []>} : vector<128x256xbf16>, vector<256x128xbf16>, vector<128x128xf32> -> vector<128x128xf32>
    %c0_3 = arith.constant 0 : index
    %c0_4 = arith.constant 0 : index
    %3 = vector.load %arg3[%c0_3, %c0_4] : memref<1x128xf32, #tpu.memory_space<vmem>>, vector<1x128xf32>
    %4 = vector.broadcast %3 : vector<1x128xf32> to vector<128x128xf32>
    %5 = arith.addf %2, %4 : vector<128x128xf32>
    %cst_5 = arith.constant 0.000000e+00 : f32
    %6 = vector.broadcast %cst_5 : f32 to vector<128x128xf32>
    %7 = arith.maximumf %5, %6 : vector<128x128xf32>
    %8 = arith.truncf %7 : vector<128x128xf32> to vector<128x128xbf16>
    %c0_6 = arith.constant 0 : index
    %c0_7 = arith.constant 0 : index
    %9 = vector.load %arg4[%c0_6, %c0_7] : memref<128x128xbf16, #tpu.memory_space<vmem>>, vector<128x128xbf16>
    tpu.vector_store %arg4[%c0_6, %c0_7], %8 {strides = array<i32>} : memref<128x128xbf16, #tpu.memory_space<vmem>>, vector<128x128xbf16>,
    return
  }
  func.func @transform_0(%arg0: i32) -> (i32, i32) {
    %c0_i32 = arith.constant 0 : i32
    %c0_i32_0 = arith.constant 0 : i32
    return %arg0, %c0_i32 : i32, i32
  }
  func.func @transform_1(%arg0: i32) -> (i32, i32) {
    %c0_i32 = arith.constant 0 : i32
    %c0_i32_0 = arith.constant 0 : i32
    %c0_i32_1 = arith.constant 0 : i32
    return %c0_i32, %c0_i32_0 : i32, i32
  }
  func.func @transform_2(%arg0: i32) -> (i32, i32) {
    %c0_i32 = arith.constant 0 : i32
    %c0_i32_0 = arith.constant 0 : i32
    %c0_i32_1 = arith.constant 0 : i32
    return %c0_i32, %c0_i32_0 : i32, i32
  }
  func.func @transform_3(%arg0: i32) -> (i32, i32) {
    %c0_i32 = arith.constant 0 : i32
    %c0_i32_0 = arith.constant 0 : i32
    return %arg0, %c0_i32 : i32, i32
  }
}

</mosaic_0001>

<llo_original>
// kernel: conv_im2col_bn.1
$region0: #{conv_im2col_bn.1}
  #allocation0 [shape = 'u32[]', space=smem, size = 0x4, offset = 0x4, fixed_abs, tag = 'smem constant byte address 0x4 - core index']
  #allocation1 [shape = 'u32[72,128]{1,0:T(1,128)}', space=vmem, size = 0x9000, scoped, tag = 'internal scratch']
  %s0 = inlined_call_operand.vmem [shape: bf16[256,256], index: 0, kind: input, shape index: {}]
  %s1 = inlined_call_operand.vmem [shape: bf16[256,128], index: 1, kind: input, shape index: {}]
  %s2 = inlined_call_operand.vmem [shape: f32[1,128], index: 2, kind: input, shape index: {}]
  %s3 = inlined_call_operand.hbm [shape: bf16[256,128], index: 3, kind: output, shape index: {}]
  %s4 = sld [smem:[#allocation0]]
  $region45: #{conv_im2col_bn.1} parent=0
    _
  %s6 = ssub.s32 1, %s4
  %s7 = scalar_select 0, %s6, %s4
  $region1: #{conv_im2col_bn.1} parent=0
    #allocation2 [shape = 'u8[65536]{0}', space=vmem, size = 0x10000, scoped, tag = 'output window, operand 0']
    #allocation3 [shape = 's32[2]{0}', space=sflag, size = 0x8, scoped, tag = 'scoped memory for conv_im2col_bn.1']
    %8 = vsyncpa [#allocation3], 0
    %s9 = scalar_lea.sflag [#allocation3], 1
    %10 = vsyncpa %s9, 0
    loop: start=0, step=1, limit=4
    $region2: #{conv_im2col_bn.1} parent=1 // loop_pre_header
      _
    $region3: #{conv_im2col_bn.1} parent=1 // loop_header
      %s12 = sphi 0, %s16
      %p13 = scmp.ge.s32.totalorder %s12, 4
      %s22 = sphi 0, %s24
      %s25 = sphi 0, %s22
      %s26 = sphi 0, %s25
      %s42 = sphi 0, %s26
      %s46 = sphi 0, %s46
      %s48 = sphi 0, %s46
      %s49 = sphi 0, %s48
      %s63 = sphi 0, %s49
      %s67 = sphi 0, %s67
      %s69 = sphi 0, %s67
      %s70 = sphi 0, %s69
      %s84 = sphi 0, %s70
      %s90 = sphi 0, %s92
      %s93 = sphi 0, %s90
      %s94 = sphi 0, %s93
      %s110 = sphi 0, %s94
    $region4: #{conv_im2col_bn.1} parent=1 // loop_header_branch
      %15 = sbr.rel (%p13) target = $region8
    $region5: #{conv_im2col_bn.1} parent=1 // loop_body
      %s17 = ssub.s32 %s12, 1
      %s18 = ssub.s32 %s12, 2
      %s19 = sadd.s32 %s12, 1
      %s20 = ssub.s32 %s12, %s19
      %p21 = scmp.eq.s32.totalorder %s20, 0
      %s23 = sadd.s32 %s22, 1
      %s24 = scalar_select %p21, %s22, %s23
      %p27 = pneg %p21
      %p28 = scmp.eq.s32.totalorder %s12, 1
      %p29 = por %p27, %p28
      %p30 = scmp.ne.s32.totalorder %s22, %s25
      %p31 = scmp.eq.s32.totalorder %s12, 0
      %p32 = por %p30, %p31
      %p33 = scmp.ne.s32.totalorder %s22, %s25
      %p34 = scmp.eq.s32.totalorder %s17, 1
      %p35 = por %p33, %p34
      %p36 = scmp.ne.s32.totalorder %s25, %s26
      %p37 = scmp.eq.s32.totalorder %s17, 0
      %p38 = por %p36, %p37
      %p39 = scmp.ne.s32.totalorder %s25, %s26
      %p40 = scmp.eq.s32.totalorder %s18, 1
      %p41 = por %p39, %p40
      %p43 = scmp.ne.s32.totalorder %s26, %s42
      %p44 = scmp.eq.s32.totalorder %s18, 0
      %p45 = por %p43, %p44
      %s47 = sadd.s32 %s46, 1
      %p50 = scmp.eq.s32.totalorder %s12, 1
      %p51 = scmp.ne.s32.totalorder %s46, %s48
      %p52 = scmp.eq.s32.totalorder %s12, 0
      %p53 = por %p51, %p52
      %p54 = scmp.ne.s32.totalorder %s46, %s48
      %p55 = scmp.eq.s32.totalorder %s17, 1
      %p56 = por %p54, %p55
      %p57 = scmp.ne.s32.totalorder %s48, %s49
      %p58 = scmp.eq.s32.totalorder %s17, 0
      %p59 = por %p57, %p58
      %p60 = scmp.ne.s32.totalorder %s48, %s49
      %p61 = scmp.eq.s32.totalorder %s18, 1
      %p62 = por %p60, %p61
      %p64 = scmp.ne.s32.totalorder %s49, %s63
      %p65 = scmp.eq.s32.totalorder %s18, 0
      %p66 = por %p64, %p65
      %s68 = sadd.s32 %s67, 1
      %p71 = scmp.eq.s32.totalorder %s12, 1
      %p72 = scmp.ne.s32.totalorder %s67, %s69
      %p73 = scmp.eq.s32.totalorder %s12, 0
      %p74 = por %p72, %p73
      %p75 = scmp.ne.s32.totalorder %s67, %s69
      %p76 = scmp.eq.s32.totalorder %s17, 1
      %p77 = por %p75, %p76
      %p78 = scmp.ne.s32.totalorder %s69, %s70
      %p79 = scmp.eq.s32.totalorder %s17, 0
      %p80 = por %p78, %p79
      %p81 = scmp.ne.s32.totalorder %s69, %s70
      %p82 = scmp.eq.s32.totalorder %s18, 1
      %p83 = por %p81, %p82
      %p85 = scmp.ne.s32.totalorder %s70, %s84
      %p86 = scmp.eq.s32.totalorder %s18, 0
      %p87 = por %p85, %p86
      %s88 = ssub.s32 %s12, %s19
      %p89 = scmp.eq.s32.totalorder %s88, 0
      %s91 = sadd.s32 %s90, 1
      %s92 = scalar_select %p89, %s90, %s91
      %p95 = pneg %p89
      %p96 = scmp.eq.s32.totalorder %s12, 1
      %p97 = por %p95, %p96
      %p98 = scmp.ne.s32.totalorder %s90, %s93
      %p99 = scmp.eq.s32.totalorder %s12, 0
      %p100 = por %p98, %p99
      %p101 = scmp.ne.s32.totalorder %s90, %s93
      %p102 = scmp.eq.s32.totalorder %s17, 1
      %p103 = por %p101, %p102
      %p104 = scmp.ne.s32.totalorder %s93, %s94
      %p105 = scmp.eq.s32.totalorder %s17, 0
      %p106 = por %p104, %p105
      %p107 = scmp.ne.s32.totalorder %s93, %s94
      %p108 = scmp.eq.s32.totalorder %s18, 1
      %p109 = por %p107, %p108
      %p111 = scmp.ne.s32.totalorder %s94, %s110
      %p112 = scmp.eq.s32.totalorder %s18, 0
      %p113 = por %p111, %p112
      %p114 = scmp.le.s32.totalorder 1, %s12
      %p115 = scmp.lt.s32.totalorder %s12, 3
      %p116 = pnand %p114, %p115
      %p117 = pneg %p116
      // Predicated region
      $region9: #{conv_im2col_bn.1} parent=5 // pred_check
        _
      $region10: #{conv_im2col_bn.1} parent=5 // pred_check_branch
        %119 = sbr.rel (%p116) target = $region12
      $region11: #{conv_im2col_bn.1} parent=5 // pred_region
        %s120 = ssub.s32 %s12, 1
        // Predicated region
        $region13: #{conv_im2col_bn.1} parent=11 // pred_check
          %p121 = pneg %p59
        $region14: #{conv_im2col_bn.1} parent=11 // pred_check_branch
          %123 = sbr.rel (%p121) target = $region16
        $region15: #{conv_im2col_bn.1} parent=11 // pred_region
          _
        $region16: #{conv_im2col_bn.1} parent=11 // pred_fallthru
          _
        // Predicated region
        $region17: #{conv_im2col_bn.1} parent=11 // pred_check
          %p124 = pneg %p80
        $region18: #{conv_im2col_bn.1} parent=11 // pred_check_branch
          %126 = sbr.rel (%p124) target = $region20
        $region19: #{conv_im2col_bn.1} parent=11 // pred_region
          _
        $region20: #{conv_im2col_bn.1} parent=11 // pred_fallthru
          _
      $region12: #{conv_im2col_bn.1} parent=5 // pred_fallthru
        _
      %p127 = scmp.lt.s32.totalorder %s12, 2
      // Predicated region
      $region21: #{conv_im2col_bn.1} parent=5 // pred_check
        %p128 = pneg %p127
      $region22: #{conv_im2col_bn.1} parent=5 // pred_check_branch
        %130 = sbr.rel (%p128) target = $region24
      $region23: #{conv_im2col_bn.1} parent=5 // pred_region
        // Predicated region
        $region25: #{conv_im2col_bn.1} parent=23 // pred_check
          %p131 = pneg %p32
        $region26: #{conv_im2col_bn.1} parent=23 // pred_check_branch
          %133 = sbr.rel (%p131) target = $region28
        $region27: #{conv_im2col_bn.1} parent=23 // pred_region
          %s134 = smul.u32 16, %s12
          %p135 = scmp.lt.s32.totalorder %s134, 31
          %s136 = scalar_select %p135, %s134, 31
          %s137 = smul.addr %s136, 2
          %s138 = smul.addr %s137, 4
          %s139 = scalar_lea.vmem %s0, %s138
          %s140 = smul.u32 16, %s12
        $region28: #{conv_im2col_bn.1} parent=23 // pred_fallthru
          _
      $region24: #{conv_im2col_bn.1} parent=5 // pred_fallthru
        _
      %p141 = scmp.le.s32.totalorder 1, %s12
      %p142 = scmp.lt.s32.totalorder %s12, 3
      %p143 = pnand %p141, %p142
      %p144 = pneg %p143
      // Predicated region
      $region29: #{conv_im2col_bn.1} parent=5 // pred_check
        _
      $region30: #{conv_im2col_bn.1} parent=5 // pred_check_branch
        %146 = sbr.rel (%p143) target = $region32
      $region31: #{conv_im2col_bn.1} parent=5 // pred_region
        %s147 = ssub.s32 %s12, 1
        %s148 = smul.u32 16, %s17
        %p149 = scmp.lt.s32.totalorder %s148, 31
        %s150 = scalar_select %p149, %s148, 31
        %s151 = smul.addr %s150, 2
        %s152 = smul.addr %s151, 4
        %s153 = scalar_lea.vmem %s0, %s152
        %p154 = pneg %p38
        %p155 = pneg %p35
        %p156 = pneg %p59
        %p157 = pneg %p56
        %p158 = pneg %p80
        %p159 = pneg %p77
        %p160 = pneg %p106
        %p161 = pneg %p103
        %s162 = sand.u32 %s93, 1
        %s163 = scalar_lea.sflag [#allocation3], %s162
        %s164 = sand.u32 %s93, 1
        %s165 = smul.addr %s164, 64
        %s166 = scalar_lea.vmem [#allocation2], %s165
        %s167 = smul.u32 16, %s17
        %p168 = scmp.lt.s32.totalorder %s167, 31
        %s169 = scalar_select %p168, %s167, 31
        %s170 = smul.addr %s169, 2
        %s171 = smul.addr %s170, 4
        %s172 = scalar_lea.vmem %s0, %s171
        %s173 = smul.u32 16, %s17
        %s174 = smul.u32 16, %s17
        %v175 = vld [vmem:[%s172] sm:$0xff]
        %v176 = vld [vmem:[%s172 + $0x8] sm:$0xff]
        %v177 = vld [vmem:[%s172 + $0x10] sm:$0xff]
        %v178 = vld [vmem:[%s172 + $0x18] sm:$0xff]
        %v179 = vld [vmem:[%s172 + $0x20] sm:$0xff]
        %v180 = vld [vmem:[%s172 + $0x28] sm:$0xff]
        %v181 = vld [vmem:[%s172 + $0x30] sm:$0xff]
        %v182 = vld [vmem:[%s172 + $0x38] sm:$0xff]
        %v183 = vld [vmem:[%s172 + $0x40] sm:$0xff]
        %v184 = vld [vmem:[%s172 + $0x48] sm:$0xff]
        %v185 = vld [vmem:[%s172 + $0x50] sm:$0xff]
        %v186 = vld [vmem:[%s172 + $0x58] sm:$0xff]
        %v187 = vld [vmem:[%s172 + $0x60] sm:$0xff]
        %v188 = vld [vmem:[%s172 + $0x68] sm:$0xff]
        %v189 = vld [vmem:[%s172 + $0x70] sm:$0xff]
        %v190 = vld [vmem:[%s172 + $0x78] sm:$0xff]
        %v191 = vld [vmem:[%s1] sm:$0xf]
        %v192 = vld [vmem:[%s1 + $0x4] sm:$0xf]
        %v193 = vld [vmem:[%s1 + $0x8] sm:$0xf]
        %v194 = vld [vmem:[%s1 + $0xc] sm:$0xf]
        %v195 = vld [vmem:[%s1 + $0x10] sm:$0xf]
        %v196 = vld [vmem:[%s1 + $0x14] sm:$0xf]
        %v197 = vld [vmem:[%s1 + $0x18] sm:$0xf]
        %v198 = vld [vmem:[%s1 + $0x1c] sm:$0xf]
        %v199 = vld [vmem:[%s1 + $0x20] sm:$0xf]
        %v200 = vld [vmem:[%s1 + $0x24] sm:$0xf]
        %v201 = vld [vmem:[%s1 + $0x28] sm:$0xf]
        %v202 = vld [vmem:[%s1 + $0x2c] sm:$0xf]
        %v203 = vld [vmem:[%s1 + $0x30] sm:$0xf]
        %v204 = vld [vmem:[%s1 + $0x34] sm:$0xf]
        %v205 = vld [vmem:[%s1 + $0x38] sm:$0xf]
        %v206 = vld [vmem:[%s1 + $0x3c] sm:$0xf]
        %v207 = vld [vmem:[%s1 + $0x40] sm:$0xf]
        %v208 = vld [vmem:[%s1 + $0x44] sm:$0xf]
        %v209 = vld [vmem:[%s1 + $0x48] sm:$0xf]
        %v210 = vld [vmem:[%s1 + $0x4c] sm:$0xf]
        %v211 = vld [vmem:[%s1 + $0x50] sm:$0xf]
        %v212 = vld [vmem:[%s1 + $0x54] sm:$0xf]
        %v213 = vld [vmem:[%s1 + $0x58] sm:$0xf]
        %v214 = vld [vmem:[%s1 + $0x5c] sm:$0xf]
        %v215 = vld [vmem:[%s1 + $0x60] sm:$0xf]
        %v216 = vld [vmem:[%s1 + $0x64] sm:$0xf]
        %v217 = vld [vmem:[%s1 + $0x68] sm:$0xf]
        %v218 = vld [vmem:[%s1 + $0x6c] sm:$0xf]
        %v219 = vld [vmem:[%s1 + $0x70] sm:$0xf]
        %v220 = vld [vmem:[%s1 + $0x74] sm:$0xf]
        %v221 = vld [vmem:[%s1 + $0x78] sm:$0xf]
        %v222 = vld [vmem:[%s1 + $0x7c] sm:$0xf]
        %v223 = vld [vmem:[%s2] sm:$0x1]
        %v225 = vperm.slane %v223, 0
        %v243 = vunpack.c.l.b16 %v175
        %v244 = vunpack.c.h.b16 %v175
        %v245 = vunpack.c.l.b16 %v176
        %v246 = vunpack.c.h.b16 %v176
        %v247 = vunpack.c.l.b16 %v177
        %v248 = vunpack.c.h.b16 %v177
        %v249 = vunpack.c.l.b16 %v178
        %v250 = vunpack.c.h.b16 %v178
        %v251 = vunpack.c.l.b16 %v179
        %v252 = vunpack.c.h.b16 %v179
        %v253 = vunpack.c.l.b16 %v180
        %v254 = vunpack.c.h.b16 %v180
        %v255 = vunpack.c.l.b16 %v181
        %v256 = vunpack.c.h.b16 %v181
        %v257 = vunpack.c.l.b16 %v182
        %v258 = vunpack.c.h.b16 %v182
        %v259 = vunpack.c.l.b16 %v183
        %v260 = vunpack.c.h.b16 %v183
        %v261 = vunpack.c.l.b16 %v184
        %v262 = vunpack.c.h.b16 %v184
        %v263 = vunpack.c.l.b16 %v185
        %v264 = vunpack.c.h.b16 %v185
        %v265 = vunpack.c.l.b16 %v186
        %v266 = vunpack.c.h.b16 %v186
        %v267 = vunpack.c.l.b16 %v187
        %v268 = vunpack.c.h.b16 %v187
        %v269 = vunpack.c.l.b16 %v188
        %v270 = vunpack.c.h.b16 %v188
        %v271 = vunpack.c.l.b16 %v189
        %v272 = vunpack.c.h.b16 %v189
        %v273 = vunpack.c.l.b16 %v190
        %v274 = vunpack.c.h.b16 %v190
        %v275 = vpack.c.b16 %v245, %v243
        %v276 = vpack.c.b16 %v246, %v244
        %v277 = vpack.c.b16 %v249, %v247
        %v278 = vpack.c.b16 %v250, %v248
        %v279 = vpack.c.b16 %v253, %v251
        %v280 = vpack.c.b16 %v254, %v252
        %v281 = vpack.c.b16 %v257, %v255
        %v282 = vpack.c.b16 %v258, %v256
        %v283 = vpack.c.b16 %v261, %v259
        %v284 = vpack.c.b16 %v262, %v260
        %v285 = vpack.c.b16 %v265, %v263
        %v286 = vpack.c.b16 %v266, %v264
        %v287 = vpack.c.b16 %v269, %v267
        %v288 = vpack.c.b16 %v270, %v268
        %v289 = vpack.c.b16 %v273, %v271
        %v290 = vpack.c.b16 %v274, %v272
        %v339 = vunpack.c.l.b16 %v191
        %v340 = vunpack.c.l.b16 %v192
        %v341 = vunpack.c.l.b16 %v193
        %v342 = vunpack.c.l.b16 %v194
        %v343 = vunpack.c.l.b16 %v195
        %v344 = vunpack.c.l.b16 %v196
        %v345 = vunpack.c.l.b16 %v197
        %v346 = vunpack.c.l.b16 %v198
        %v347 = vunpack.c.l.b16 %v199
        %v348 = vunpack.c.l.b16 %v200
        %v349 = vunpack.c.l.b16 %v201
        %v350 = vunpack.c.l.b16 %v202
        %v351 = vunpack.c.l.b16 %v203
        %v352 = vunpack.c.l.b16 %v204
        %v353 = vunpack.c.l.b16 %v205
        %v354 = vunpack.c.l.b16 %v206
        %v355 = vunpack.c.l.b16 %v207
        %v356 = vunpack.c.l.b16 %v208
        %v357 = vunpack.c.l.b16 %v209
        %v358 = vunpack.c.l.b16 %v210
        %v359 = vunpack.c.l.b16 %v211
        %v360 = vunpack.c.l.b16 %v212
        %v361 = vunpack.c.l.b16 %v213
        %v362 = vunpack.c.l.b16 %v214
        %v363 = vunpack.c.l.b16 %v215
        %v364 = vunpack.c.l.b16 %v216
        %v365 = vunpack.c.l.b16 %v217
        %v366 = vunpack.c.l.b16 %v218
        %v367 = vunpack.c.l.b16 %v219
        %v368 = vunpack.c.l.b16 %v220
        %v369 = vunpack.c.l.b16 %v221
        %v370 = vunpack.c.l.b16 %v222
        %v371 = vpack.c.b16 %v340, %v339
        %v372 = vpack.c.b16 %v342, %v341
        %v373 = vpack.c.b16 %v344, %v343
        %v374 = vpack.c.b16 %v346, %v345
        %v375 = vpack.c.b16 %v348, %v347
        %v376 = vpack.c.b16 %v350, %v349
        %v377 = vpack.c.b16 %v352, %v351
        %v378 = vpack.c.b16 %v354, %v353
        %v379 = vpack.c.b16 %v356, %v355
        %v380 = vpack.c.b16 %v358, %v357
        %v381 = vpack.c.b16 %v360, %v359
        %v382 = vpack.c.b16 %v362, %v361
        %v383 = vpack.c.b16 %v364, %v363
        %v384 = vpack.c.b16 %v366, %v365
        %v385 = vpack.c.b16 %v368, %v367
        %v386 = vpack.c.b16 %v370, %v369
        %403 = vmatpush.bf16.msra.mxu0 %v378
        %404 = vmatpush.bf16.msra.mxu0 %v377
        %405 = vmatpush.bf16.msra.mxu0 %v376
        %406 = vmatpush.bf16.msra.mxu0 %v375
        %407 = vmatpush.bf16.msra.mxu0 %v374
        %408 = vmatpush.bf16.msra.mxu0 %v373
        %409 = vmatpush.bf16.msra.mxu0 %v372
        %410 = vmatpush.bf16.msra.mxu0 %v371
        %411 = vmatmul.bf16.gmra.mxu0 %v275
        %v412 = vpop.f32.mrf.mxu0
        %v413 = vadd.f32 %v225, %v412
        %v414 = vpop.f32.mrf.mxu0
        %v415 = vadd.f32 %v225, %v414
        %416 = vmatmul.bf16.gmra.mxu0 %v277
        %v417 = vpop.f32.mrf.mxu0
        %v418 = vadd.f32 %v225, %v417
        %v419 = vpop.f32.mrf.mxu0
        %v420 = vadd.f32 %v225, %v419
        %421 = vmatmul.bf16.gmra.mxu0 %v279
        %v422 = vpop.f32.mrf.mxu0
        %v423 = vadd.f32 %v225, %v422
        %v424 = vpop.f32.mrf.mxu0
        %v425 = vadd.f32 %v225, %v424
        %426 = vmatmul.bf16.gmra.mxu0 %v281
        %v427 = vpop.f32.mrf.mxu0
        %v428 = vadd.f32 %v225, %v427
        %v429 = vpop.f32.mrf.mxu0
        %v430 = vadd.f32 %v225, %v429
        %431 = vmatmul.bf16.gmra.mxu0 %v283
        %v432 = vpop.f32.mrf.mxu0
        %v433 = vadd.f32 %v225, %v432
        %v434 = vpop.f32.mrf.mxu0
        %v435 = vadd.f32 %v225, %v434
        %436 = vmatmul.bf16.gmra.mxu0 %v285
        %v437 = vpop.f32.mrf.mxu0
        %v438 = vadd.f32 %v225, %v437
        %v439 = vpop.f32.mrf.mxu0
        %v440 = vadd.f32 %v225, %v439
        %441 = vmatmul.bf16.gmra.mxu0 %v287
        %v442 = vpop.f32.mrf.mxu0
        %v443 = vadd.f32 %v225, %v442
        %v444 = vpop.f32.mrf.mxu0
        %v445 = vadd.f32 %v225, %v444
        %446 = vmatmul.bf16.gmra.mxu0 %v289
        %v447 = vpop.f32.mrf.mxu0
        %v448 = vadd.f32 %v225, %v447
        %v449 = vpop.f32.mrf.mxu0
        %v450 = vadd.f32 %v225, %v449
        %451 = vdwg.mxu0
        %452 = vmatpush.bf16.msra.mxu0 %v386
        %453 = vmatpush.bf16.msra.mxu0 %v385
        %454 = vmatpush.bf16.msra.mxu0 %v384
        %455 = vmatpush.bf16.msra.mxu0 %v383
        %456 = vmatpush.bf16.msra.mxu0 %v382
        %457 = vmatpush.bf16.msra.mxu0 %v381
        %458 = vmatpush.bf16.msra.mxu0 %v380
        %459 = vmatpush.bf16.msra.mxu0 %v379
        %460 = vmatmul.bf16.gmra.mxu0 %v276
        %v461 = vpop.f32.mrf.mxu0
        %v462 = vadd.f32 %v413, %v461
        %v463 = vpop.f32.mrf.mxu0
        %v464 = vadd.f32 %v415, %v463
        %465 = vmatmul.bf16.gmra.mxu0 %v278
        %v466 = vpop.f32.mrf.mxu0
        %v467 = vadd.f32 %v418, %v466
        %v468 = vpop.f32.mrf.mxu0
        %v469 = vadd.f32 %v420, %v468
        %470 = vmatmul.bf16.gmra.mxu0 %v280
        %v471 = vpop.f32.mrf.mxu0
        %v472 = vadd.f32 %v423, %v471
        %v473 = vpop.f32.mrf.mxu0
        %v474 = vadd.f32 %v425, %v473
        %475 = vmatmul.bf16.gmra.mxu0 %v282
        %v476 = vpop.f32.mrf.mxu0
        %v477 = vadd.f32 %v428, %v476
        %v478 = vpop.f32.mrf.mxu0
        %v479 = vadd.f32 %v430, %v478
        %480 = vmatmul.bf16.gmra.mxu0 %v284
        %v481 = vpop.f32.mrf.mxu0
        %v482 = vadd.f32 %v433, %v481
        %v483 = vpop.f32.mrf.mxu0
        %v484 = vadd.f32 %v435, %v483
        %485 = vmatmul.bf16.gmra.mxu0 %v286
        %v486 = vpop.f32.mrf.mxu0
        %v487 = vadd.f32 %v438, %v486
        %v488 = vpop.f32.mrf.mxu0
        %v489 = vadd.f32 %v440, %v488
        %490 = vmatmul.bf16.gmra.mxu0 %v288
        %v491 = vpop.f32.mrf.mxu0
        %v492 = vadd.f32 %v443, %v491
        %v493 = vpop.f32.mrf.mxu0
        %v494 = vadd.f32 %v445, %v493
        %495 = vmatmul.bf16.gmra.mxu0 %v290
        %v496 = vpop.f32.mrf.mxu0
        %v497 = vadd.f32 %v448, %v496
        %v498 = vpop.f32.mrf.mxu0
        %v499 = vadd.f32 %v450, %v498
        %500 = vdwg.mxu0
        %v501 = vmax.f32 %v462, 0.0
        %v502 = vmax.f32 %v464, 0.0
        %v503 = vmax.f32 %v467, 0.0
        %v504 = vmax.f32 %v469, 0.0
        %v505 = vmax.f32 %v472, 0.0
        %v506 = vmax.f32 %v474, 0.0
        %v507 = vmax.f32 %v477, 0.0
        %v508 = vmax.f32 %v479, 0.0
        %v509 = vmax.f32 %v482, 0.0
        %v510 = vmax.f32 %v484, 0.0
        %v511 = vmax.f32 %v487, 0.0
        %v512 = vmax.f32 %v489, 0.0
        %v513 = vmax.f32 %v492, 0.0
        %v514 = vmax.f32 %v494, 0.0
        %v515 = vmax.f32 %v497, 0.0
        %v516 = vmax.f32 %v499, 0.0
        %v517 = vpack.c.bf16 %v501, %v501
        %v518 = vpack.c.bf16 %v502, %v502
        %v519 = vpack.c.bf16 %v503, %v503
        %v520 = vpack.c.bf16 %v504, %v504
        %v521 = vpack.c.bf16 %v505, %v505
        %v522 = vpack.c.bf16 %v506, %v506
        %v523 = vpack.c.bf16 %v507, %v507
        %v524 = vpack.c.bf16 %v508, %v508
        %v525 = vpack.c.bf16 %v509, %v509
        %v526 = vpack.c.bf16 %v510, %v510
        %v527 = vpack.c.bf16 %v511, %v511
        %v528 = vpack.c.bf16 %v512, %v512
        %v529 = vpack.c.bf16 %v513, %v513
        %v530 = vpack.c.bf16 %v514, %v514
        %v531 = vpack.c.bf16 %v515, %v515
        %v532 = vpack.c.bf16 %v516, %v516
        %533 = vst [vmem:[%s166] sm:$0xf] %v517
        %534 = vst [vmem:[%s166 + $0x4] sm:$0xf] %v518
        %535 = vst [vmem:[%s166 + $0x8] sm:$0xf] %v519
        %536 = vst [vmem:[%s166 + $0xc] sm:$0xf] %v520
        %537 = vst [vmem:[%s166 + $0x10] sm:$0xf] %v521
        %538 = vst [vmem:[%s166 + $0x14] sm:$0xf] %v522
        %539 = vst [vmem:[%s166 + $0x18] sm:$0xf] %v523
        %540 = vst [vmem:[%s166 + $0x1c] sm:$0xf] %v524
        %541 = vst [vmem:[%s166 + $0x20] sm:$0xf] %v525
        %542 = vst [vmem:[%s166 + $0x24] sm:$0xf] %v526
        %543 = vst [vmem:[%s166 + $0x28] sm:$0xf] %v527
        %544 = vst [vmem:[%s166 + $0x2c] sm:$0xf] %v528
        %545 = vst [vmem:[%s166 + $0x30] sm:$0xf] %v529
        %546 = vst [vmem:[%s166 + $0x34] sm:$0xf] %v530
        %547 = vst [vmem:[%s166 + $0x38] sm:$0xf] %v531
        %548 = vst [vmem:[%s166 + $0x3c] sm:$0xf] %v532
        %s549 = sand.u32 %s93, 1
        %s550 = scalar_lea.sflag [#allocation3], %s549
        %s551 = sand.u32 %s93, 1
        %s552 = smul.addr %s551, 64
        %s553 = scalar_lea.vmem [#allocation2], %s552
        // Predicated region
        $region33: #{conv_im2col_bn.1} parent=31 // pred_check
          %p554 = pneg %p103
        $region34: #{conv_im2col_bn.1} parent=31 // pred_check_branch
          %556 = sbr.rel (%p554) target = $region36
        $region35: #{conv_im2col_bn.1} parent=31 // pred_region
          %s557 = smul.u32 16, %s17
          %559 = vsyncadd %s550, 0
          %s560 = smul.addr %s557, 4
          %s561 = scalar_lea.hbm %s3, %s560
          %s562 = sshll.u32 %s553, 4
          %s563 = int_to_ptr.vmem [resolvable:$true] %s562
          %s564 = sshll.u32 %s561, 4
          %s565 = int_to_ptr.hbm [resolvable:$true] %s564
          %570 = dma.vmem_to_hbm [thread:$0]  %s563, 1024, %s565, %s550, 64, 64, 4
        $region36: #{conv_im2col_bn.1} parent=31 // pred_fallthru
          _
      $region32: #{conv_im2col_bn.1} parent=5 // pred_fallthru
        _
      %p571 = scmp.le.s32.totalorder 2, %s12
      // Predicated region
      $region37: #{conv_im2col_bn.1} parent=5 // pred_check
        %p572 = pneg %p571
      $region38: #{conv_im2col_bn.1} parent=5 // pred_check_branch
        %574 = sbr.rel (%p572) target = $region40
      $region39: #{conv_im2col_bn.1} parent=5 // pred_region
        %s575 = ssub.s32 %s12, 2
        // Predicated region
        $region41: #{conv_im2col_bn.1} parent=39 // pred_check
          %p576 = pneg %p109
        $region42: #{conv_im2col_bn.1} parent=39 // pred_check_branch
          %578 = sbr.rel (%p576) target = $region44
        $region43: #{conv_im2col_bn.1} parent=39 // pred_region
          %s579 = sand.u32 %s94, 1
          %s580 = scalar_lea.sflag [#allocation3], %s579
          %s581 = sand.u32 %s94, 1
          %s582 = smul.addr %s581, 64
          %s583 = scalar_lea.vmem [#allocation2], %s582
          %585 = dma.done %s580, 1024
        $region44: #{conv_im2col_bn.1} parent=39 // pred_fallthru
          _
      $region40: #{conv_im2col_bn.1} parent=5 // pred_fallthru
        _
    $region6: #{conv_im2col_bn.1} parent=1 // loop_footer
      %s16 = sadd.s32 1, %s12
    $region7: #{conv_im2col_bn.1} parent=1 // loop_footer_branch
      %11 = sbr.rel target = $region3
    $region8: #{conv_im2col_bn.1} parent=1 // loop_exit
      _
    %586 = vsyncpa [#allocation3], 1
    %s587 = scalar_lea.sflag [#allocation3], 1
    %588 = vsyncpa %s587, 1

</llo_original>
